<compile_context>
chip_gen: v7x
topology: tpu7x:2x2x1
jax: 0.10.0
libtpu: 0.0.40
codegen_flags: <defaults>
</compile_context>

<pallas_src>
import jax
import jax.numpy as jnp
from jax.experimental import pallas as pl
from jax.experimental.pallas import tpu as pltpu


def _blv_ce_kernel(pred_ref, noise_ref, freq_ref, tgt_ref, loss_ref):
    # pred_ref / noise_ref: (1, C, T) native dtype (classes on sublane, pixels on lane)
    # freq_ref:             (1, C, 1) f32   (per-class scaled frequency)
    # tgt_ref:              (1, 1, T) int32
    # loss_ref:             (1, 1, T) f32
    pred = pred_ref[...].astype(jnp.float32)
    noise = noise_ref[...].astype(jnp.float32)

    # |clamp(noise, -1, 1)| == min(|noise|, 1)  -- one VALU op fewer
    variation = jnp.minimum(jnp.abs(noise), 1.0)
    logits = pred + variation * freq_ref[...]                 # freq bcast over lanes

    # numerically stable cross-entropy, reduced over the class (sublane) axis,
    # expressed purely in shifted logits:
    #   loss = log(sum(exp(logits - m))) - (logits[target] - m)
    m = jnp.max(logits, axis=1, keepdims=True)                # (1,1,T)
    shifted = logits - m
    lse_rel = jnp.log(jnp.sum(jnp.exp(shifted), axis=1, keepdims=True))

    # gather shifted[target] via one-hot mask over the class (sublane) axis
    class_ids = jax.lax.broadcasted_iota(jnp.int32, shifted.shape, 1)   # (1,C,T)
    tgt = tgt_ref[...]                                                   # (1,1,T)
    tgt_shift = jnp.sum(
        jnp.where(class_ids == tgt, shifted, 0.0), axis=1, keepdims=True
    )                                                                    # (1,1,T)

    loss_ref[...] = lse_rel - tgt_shift


_LANE_CAP = 16384  # generous: per-step overhead (~0.35 us) is hidden well before this


def _pick_tile_hw(C, HW, pred_bytes, noise_bytes, *, vmem_budget):
    """Largest lane tile (multiple of 128) whose real VMEM footprint fits the
    budget.  Accounts for sublane padding of the class dim (multiple of 8) and
    ~4 full-tile f32 temporaries Mosaic materializes inside the kernel."""
    cp = -(-C // 8) * 8                                    # sublane-padded class count
    # double-buffered pipeline blocks: pred + noise + target(i32) + loss(f32)
    per_lane_pipe = 2 * (cp * (pred_bytes + noise_bytes) + 4 + 4)
    # in-kernel temporaries (variation, logits/shifted, exp, iota/mask) ~ 4x f32,
    # single-buffered
    per_lane_tmp = 4 * cp * 4
    per_lane = per_lane_pipe + per_lane_tmp

    tile = vmem_budget // per_lane
    hw_cap = max(128, (HW // 128) * 128)                   # never (much) bigger than the row
    tile = max(128, min(tile, _LANE_CAP, hw_cap))
    return (tile // 128) * 128


def blv_loss_forward(pred, target, noise, frequency_list, *, tile_hw=None,
                     vmem_limit_bytes=32 << 20):
    """pred: (N,C,H,W) float, target: (N,H,W) int, noise: (N,C,H,W) float
    (raw Normal(0, sigma) samples; clamp/abs happen in-kernel).

    Returns per-pixel loss of shape (N, H, W), float32 — identical to
    F.cross_entropy(pred + |clamp(noise)|*freq/freq.max(), target, reduction='none').
    """
    N, C, H, W = pred.shape
    HW = H * W

    # Free views — no transposes, no dtype casts, no padding copies.
    pred_r = pred.reshape(N, C, HW)
    noise_r = noise.reshape(N, C, HW)
    tgt_r = target.reshape(N, 1, HW)
    if tgt_r.dtype != jnp.int32:
        tgt_r = tgt_r.astype(jnp.int32)

    # per-class scaled weight: frequency_list / frequency_list.max()  (tiny, size C)
    freq = frequency_list.astype(jnp.float32)
    scaled_freq = (freq / jnp.max(freq)).reshape(1, C, 1)

    if tile_hw is None:
        tile_hw = _pick_tile_hw(
            C, HW, pred_r.dtype.itemsize, noise_r.dtype.itemsize,
            vmem_budget=int(0.6 * vmem_limit_bytes))

    num_tiles = pl.cdiv(HW, tile_hw)       # ragged last block: OOB reads are lane-local
    grid = (num_tiles, N)                  # big axis leads -> v7x megacore shards it

    loss = pl.pallas_call(
        _blv_ce_kernel,
        out_shape=jax.ShapeDtypeStruct((N, 1, HW), jnp.float32),
        grid_spec=pltpu.PrefetchScalarGridSpec(
            num_scalar_prefetch=0,
            grid=grid,
            in_specs=[
                pl.BlockSpec((1, C, tile_hw), lambda t, n: (n, 0, t)),  # pred (native dtype)
                pl.BlockSpec((1, C, tile_hw), lambda t, n: (n, 0, t)),  # noise (native dtype)
                pl.BlockSpec((1, C, 1), lambda t, n: (0, 0, 0)),        # scaled freq (resident)
                pl.BlockSpec((1, 1, tile_hw), lambda t, n: (n, 0, t)),  # target (lane-dense)
            ],
            out_specs=pl.BlockSpec((1, 1, tile_hw), lambda t, n: (n, 0, t)),  # lane-dense
        ),
        compiler_params=pltpu.CompilerParams(
            dimension_semantics=("parallel", "parallel"),
            vmem_limit_bytes=vmem_limit_bytes,
        ),
    )(pred_r, noise_r, scaled_freq, tgt_r)

    return loss.reshape(N, H, W)


def make_frequency_list(cls_num_list):
    """Mirrors BlvLoss.__init__: log(sum(n)) - log(n_c)."""
    cls = jnp.asarray(cls_num_list, dtype=jnp.float32)
    return jnp.log(jnp.sum(cls)) - jnp.log(cls)


if __name__ == "__main__":
    # small deterministic example consistent with the module: NCHW logits, NHW targets
    N, C, H, W = 2, 4, 16, 16
    sigma = 4.0

    key = jax.random.PRNGKey(0)
    k_pred, k_tgt, k_noise = jax.random.split(key, 3)

    pred = jax.random.normal(k_pred, (N, C, H, W), dtype=jnp.float32)
    target = jax.random.randint(k_tgt, (N, H, W), 0, C, dtype=jnp.int32)
    # variation sampled from Normal(0, sigma) with pred's shape (clamp/abs done in-kernel)
    noise = sigma * jax.random.normal(k_noise, (N, C, H, W), dtype=jnp.float32)

    # deterministic "cls_num_list" init (module __init__ argument)
    cls_num_list = [100, 1000, 50, 500]
    frequency_list = make_frequency_list(cls_num_list)

    loss = blv_loss_forward(pred, target, noise, frequency_list)
    loss = jax.block_until_ready(loss)

    # pure-JAX reference check of the same semantics
    variation = jnp.abs(jnp.clip(noise, -1.0, 1.0))
    scaled = variation * (frequency_list / jnp.max(frequency_list))[None, :, None, None]
    adj = pred + scaled
    logits_nhwc = jnp.transpose(adj, (0, 2, 3, 1))
    lse = jax.nn.logsumexp(logits_nhwc, axis=-1)
    tgt_logit = jnp.take_along_axis(logits_nhwc, target[..., None], axis=-1)[..., 0]
    ref = lse - tgt_logit

    assert loss.shape == (N, H, W)
    assert jnp.allclose(loss, ref, atol=1e-5, rtol=1e-5)

    print("KERNEL_OK")
</pallas_src>

<mosaic_0001>
module attributes {stable_mosaic.version = 11 : i64} {
  func.func @_blv_ce_kernel(%arg0: i32, %arg1: i32, %arg2: memref<1x4x256xf32, #tpu.memory_space<vmem>>, %arg3: memref<1x4x256xf32, #tpu.memory_space<vmem>>, %arg4: memref<1x4x1xf32, #tpu.memory_space<vmem>>, %arg5: memref<1x1x256xi32, #tpu.memory_space<vmem>>, %arg6: memref<1x1x256xf32, #tpu.memory_space<vmem>>) attributes {dimension_semantics = [#tpu.dimension_semantics<parallel>, #tpu.dimension_semantics<parallel>], iteration_bounds = array<i64: 1, 2>, scalar_prefetch = 0 : i64, scratch_operands = 0 : i64, tpu.core_type = #tpu.core_type<tc>, window_params = [{transform_indices = @transform_0, window_bounds = array<i64: 1, 4, 256>}, {transform_indices = @transform_1, window_bounds = array<i64: 1, 4, 256>}, {pipeline_mode = #tpu.pipeline_mode<synchronous>, transform_indices = @transform_2, window_bounds = array<i64: 1, 4, 1>}, {transform_indices = @transform_3, window_bounds = array<i64: 1, 1, 256>}, {transform_indices = @transform_4, window_bounds = array<i64: 1, 1, 256>}]} {
    %c0 = arith.constant 0 : index
    %c0_0 = arith.constant 0 : index
    %c0_1 = arith.constant 0 : index
    %0 = vector.load %arg2[%c0, %c0_0, %c0_1] : memref<1x4x256xf32, #tpu.memory_space<vmem>>, vector<1x4x256xf32>
    %c0_2 = arith.constant 0 : index
    %c0_3 = arith.constant 0 : index
    %c0_4 = arith.constant 0 : index
    %1 = vector.load %arg3[%c0_2, %c0_3, %c0_4] : memref<1x4x256xf32, #tpu.memory_space<vmem>>, vector<1x4x256xf32>
    %2 = math.absf %1 : vector<1x4x256xf32>
    %cst = arith.constant 1.000000e+00 : f32
    %3 = vector.broadcast %cst : f32 to vector<1x4x256xf32>
    %4 = arith.minimumf %2, %3 : vector<1x4x256xf32>
    %c0_5 = arith.constant 0 : index
    %c0_6 = arith.constant 0 : index
    %c0_7 = arith.constant 0 : index
    %5 = vector.load %arg4[%c0_5, %c0_6, %c0_7] : memref<1x4x1xf32, #tpu.memory_space<vmem>>, vector<1x4x1xf32>
    %6 = vector.broadcast %5 : vector<1x4x1xf32> to vector<1x4x256xf32>
    %7 = arith.mulf %4, %6 : vector<1x4x256xf32>
    %8 = arith.addf %0, %7 : vector<1x4x256xf32>
    %cst_8 = arith.constant dense<0xFF800000> : vector<1x256xf32>
    %9 = vector.multi_reduction <maximumf>, %8, %cst_8 [1] : vector<1x4x256xf32> to vector<1x256xf32>
    %10 = vector.shape_cast %9 : vector<1x256xf32> to vector<1x1x256xf32>
    %11 = vector.broadcast %10 : vector<1x1x256xf32> to vector<1x4x256xf32>
    %12 = arith.subf %8, %11 : vector<1x4x256xf32>
    %13 = math.exp %12 : vector<1x4x256xf32>
    %cst_9 = arith.constant dense<0.000000e+00> : vector<1x256xf32>
    %14 = vector.multi_reduction <add>, %13, %cst_9 [1] : vector<1x4x256xf32> to vector<1x256xf32>
    %15 = vector.shape_cast %14 : vector<1x256xf32> to vector<1x1x256xf32>
    %16 = math.log %15 : vector<1x1x256xf32>
    %17 = tpu.iota {dimensions = array<i32: 1>} : vector<1x4x256xi32>
    %c0_10 = arith.constant 0 : index
    %c0_11 = arith.constant 0 : index
    %c0_12 = arith.constant 0 : index
    %18 = vector.load %arg5[%c0_10, %c0_11, %c0_12] : memref<1x1x256xi32, #tpu.memory_space<vmem>>, vector<1x1x256xi32>
    %19 = vector.broadcast %18 : vector<1x1x256xi32> to vector<1x4x256xi32>
    %20 = arith.cmpi eq, %17, %19 : vector<1x4x256xi32>
    %cst_13 = arith.constant 0.000000e+00 : f32
    %21 = vector.broadcast %cst_13 : f32 to vector<1x4x256xf32>
    %22 = arith.select %20, %12, %21 : vector<1x4x256xi1>, vector<1x4x256xf32>
    %cst_14 = arith.constant dense<0.000000e+00> : vector<1x256xf32>
    %23 = vector.multi_reduction <add>, %22, %cst_14 [1] : vector<1x4x256xf32> to vector<1x256xf32>
    %24 = vector.shape_cast %23 : vector<1x256xf32> to vector<1x1x256xf32>
    %25 = arith.subf %16, %24 : vector<1x1x256xf32>
    %c0_15 = arith.constant 0 : index
    %c0_16 = arith.constant 0 : index
    %c0_17 = arith.constant 0 : index
    %26 = vector.load %arg6[%c0_15, %c0_16, %c0_17] : memref<1x1x256xf32, #tpu.memory_space<vmem>>, vector<1x1x256xf32>
    tpu.vector_store %arg6[%c0_15, %c0_16, %c0_17], %25 {strides = array<i32>} : memref<1x1x256xf32, #tpu.memory_space<vmem>>, vector<1x1x256xf32>,
    return
  }
  func.func @transform_0(%arg0: i32, %arg1: i32) -> (i32, i32, i32) {
    %c0_i32 = arith.constant 0 : i32
    %c0_i32_0 = arith.constant 0 : i32
    return %arg1, %c0_i32, %arg0 : i32, i32, i32
  }
  func.func @transform_1(%arg0: i32, %arg1: i32) -> (i32, i32, i32) {
    %c0_i32 = arith.constant 0 : i32
    %c0_i32_0 = arith.constant 0 : i32
    return %arg1, %c0_i32, %arg0 : i32, i32, i32
  }
  func.func @transform_2(%arg0: i32, %arg1: i32) -> (i32, i32, i32) {
    %c0_i32 = arith.constant 0 : i32
    %c0_i32_0 = arith.constant 0 : i32
    %c0_i32_1 = arith.constant 0 : i32
    %c0_i32_2 = arith.constant 0 : i32
    return %c0_i32, %c0_i32_0, %c0_i32_1 : i32, i32, i32
  }
  func.func @transform_3(%arg0: i32, %arg1: i32) -> (i32, i32, i32) {
    %c0_i32 = arith.constant 0 : i32
    %c0_i32_0 = arith.constant 0 : i32
    return %arg1, %c0_i32, %arg0 : i32, i32, i32
  }
  func.func @transform_4(%arg0: i32, %arg1: i32) -> (i32, i32, i32) {
    %c0_i32 = arith.constant 0 : i32
    %c0_i32_0 = arith.constant 0 : i32
    return %arg1, %c0_i32, %arg0 : i32, i32, i32
  }
}

</mosaic_0001>

<llo_original>
// kernel: tpu_custom_call.1
$region0: #{tpu_custom_call.1}
  #allocation0 [shape = 'u32[]', space=smem, size = 0x4, offset = 0x4, fixed_abs, tag = 'smem constant byte address 0x4 - core index']
  #allocation1 [shape = 'u32[144,128]{1,0:T(1,128)}', space=vmem, size = 0x12000, scoped, tag = 'internal scratch']
  %s0 = inlined_call_operand.hbm [shape: f32[2,4,256], index: 0, kind: input, shape index: {}]
  %s1 = inlined_call_operand.hbm [shape: f32[2,4,256], index: 1, kind: input, shape index: {}]
  %s2 = inlined_call_operand.vmem [shape: f32[1,4,1], index: 2, kind: input, shape index: {}]
  %s3 = inlined_call_operand.vmem [shape: s32[2,1,256], index: 3, kind: input, shape index: {}]
  %s4 = inlined_call_operand.hbm [shape: f32[2,1,256], index: 4, kind: output, shape index: {}]
  %s5 = sld [smem:[#allocation0]]
  $region57: #{tpu_custom_call.1} parent=0
    _
  %s7 = ssub.s32 1, %s5
  %s8 = scalar_select 0, %s7, %s5
  $region1: #{tpu_custom_call.1} parent=0
    #allocation2 [shape = 'u8[8192]{0}', space=vmem, size = 0x2000, scoped, tag = 'input window, operand 0']
    #allocation3 [shape = 's32[2]{0}', space=sflag, size = 0x8, scoped, tag = 'scoped memory for tpu_custom_call.1']
    #allocation4 [shape = 's32[2]{0}', space=sflag, size = 0x8, scoped, tag = 'scoped memory for tpu_custom_call.1']
    #allocation5 [shape = 'u8[8192]{0}', space=vmem, size = 0x2000, scoped, tag = 'input window, operand 1']
    #allocation6 [shape = 's32[2]{0}', space=sflag, size = 0x8, scoped, tag = 'scoped memory for tpu_custom_call.1']
    #allocation7 [shape = 'u8[2048]{0}', space=vmem, size = 0x800, scoped, tag = 'output window, operand 0']
    %9 = vsyncpa [#allocation3], 0
    %s10 = scalar_lea.sflag [#allocation3], 1
    %11 = vsyncpa %s10, 0
    %12 = vsyncpa [#allocation6], 0
    %s13 = scalar_lea.sflag [#allocation6], 1
    %14 = vsyncpa %s13, 0
    %15 = vsyncpa [#allocation4], 0
    %s16 = scalar_lea.sflag [#allocation4], 1
    %17 = vsyncpa %s16, 0
    loop: start=0, step=1, limit=4
    $region2: #{tpu_custom_call.1} parent=1 // loop_pre_header
      _
    $region3: #{tpu_custom_call.1} parent=1 // loop_header
      %s19 = sphi 0, %s23
      %p20 = scmp.ge.s32.totalorder %s19, 4
      %s26 = sphi 0, %s38
      %s27 = sphi 0, %s34
      %s28 = sphi 0, %s26
      %s29 = sphi 0, %s27
      %s30 = sphi 0, %s28
      %s31 = sphi 0, %s29
      %s43 = sphi 0, %s45
      %s46 = sphi 0, %s43
      %s47 = sphi 0, %s46
      %s63 = sphi 0, %s47
      %s71 = sphi 0, %s73
      %s74 = sphi 0, %s71
      %s75 = sphi 0, %s74
      %s91 = sphi 0, %s75
      %s95 = sphi 0, %s95
      %s97 = sphi 0, %s95
      %s98 = sphi 0, %s97
      %s112 = sphi 0, %s98
      %s120 = sphi 0, %s122
      %s123 = sphi 0, %s120
      %s124 = sphi 0, %s123
      %s140 = sphi 0, %s124
      %s148 = sphi 0, %s150
      %s151 = sphi 0, %s148
      %s152 = sphi 0, %s151
      %s168 = sphi 0, %s152
    $region4: #{tpu_custom_call.1} parent=1 // loop_header_branch
      %22 = sbr.rel (%p20) target = $region8
    $region5: #{tpu_custom_call.1} parent=1 // loop_body
      %s24 = ssub.s32 %s19, 1
      %s25 = ssub.s32 %s19, 2
      %s32 = sadd.s32 1, %s27
      %p33 = scmp.ge.s32.totalorder %s32, 2
      %s34 = scalar_select %p33, 0, %s32
      %s35 = sadd.s32 1, %s26
      %s36 = scalar_select %p33, %s35, %s26
      %p37 = scmp.ge.s32.totalorder %s36, 1
      %s38 = scalar_select %p37, 0, %s36
      %s39 = ssub.s32 %s27, %s34
      %s40 = ssub.s32 %s26, %s38
      %s41 = sor.u32 %s39, %s40
      %p42 = scmp.eq.s32.totalorder %s41, 0
      %s44 = sadd.s32 %s43, 1
      %s45 = scalar_select %p42, %s43, %s44
      %p48 = pneg %p42
      %p49 = scmp.eq.s32.totalorder %s19, 1
      %p50 = por %p48, %p49
      %p51 = scmp.ne.s32.totalorder %s43, %s46
      %p52 = scmp.eq.s32.totalorder %s19, 0
      %p53 = por %p51, %p52
      %p54 = scmp.ne.s32.totalorder %s43, %s46
      %p55 = scmp.eq.s32.totalorder %s24, 1
      %p56 = por %p54, %p55
      %p57 = scmp.ne.s32.totalorder %s46, %s47
      %p58 = scmp.eq.s32.totalorder %s24, 0
      %p59 = por %p57, %p58
      %p60 = scmp.ne.s32.totalorder %s46, %s47
      %p61 = scmp.eq.s32.totalorder %s25, 1
      %p62 = por %p60, %p61
      %p64 = scmp.ne.s32.totalorder %s47, %s63
      %p65 = scmp.eq.s32.totalorder %s25, 0
      %p66 = por %p64, %p65
      %s67 = ssub.s32 %s27, %s34
      %s68 = ssub.s32 %s26, %s38
      %s69 = sor.u32 %s67, %s68
      %p70 = scmp.eq.s32.totalorder %s69, 0
      %s72 = sadd.s32 %s71, 1
      %s73 = scalar_select %p70, %s71, %s72
      %p76 = pneg %p70
      %p77 = scmp.eq.s32.totalorder %s19, 1
      %p78 = por %p76, %p77
      %p79 = scmp.ne.s32.totalorder %s71, %s74
      %p80 = scmp.eq.s32.totalorder %s19, 0
      %p81 = por %p79, %p80
      %p82 = scmp.ne.s32.totalorder %s71, %s74
      %p83 = scmp.eq.s32.totalorder %s24, 1
      %p84 = por %p82, %p83
      %p85 = scmp.ne.s32.totalorder %s74, %s75
      %p86 = scmp.eq.s32.totalorder %s24, 0
      %p87 = por %p85, %p86
      %p88 = scmp.ne.s32.totalorder %s74, %s75
      %p89 = scmp.eq.s32.totalorder %s25, 1
      %p90 = por %p88, %p89
      %p92 = scmp.ne.s32.totalorder %s75, %s91
      %p93 = scmp.eq.s32.totalorder %s25, 0
      %p94 = por %p92, %p93
      %s96 = sadd.s32 %s95, 1
      %p99 = scmp.eq.s32.totalorder %s19, 1
      %p100 = scmp.ne.s32.totalorder %s95, %s97
      %p101 = scmp.eq.s32.totalorder %s19, 0
      %p102 = por %p100, %p101
      %p103 = scmp.ne.s32.totalorder %s95, %s97
      %p104 = scmp.eq.s32.totalorder %s24, 1
      %p105 = por %p103, %p104
      %p106 = scmp.ne.s32.totalorder %s97, %s98
      %p107 = scmp.eq.s32.totalorder %s24, 0
      %p108 = por %p106, %p107
      %p109 = scmp.ne.s32.totalorder %s97, %s98
      %p110 = scmp.eq.s32.totalorder %s25, 1
      %p111 = por %p109, %p110
      %p113 = scmp.ne.s32.totalorder %s98, %s112
      %p114 = scmp.eq.s32.totalorder %s25, 0
      %p115 = por %p113, %p114
      %s116 = ssub.s32 %s27, %s34
      %s117 = ssub.s32 %s26, %s38
      %s118 = sor.u32 %s116, %s117
      %p119 = scmp.eq.s32.totalorder %s118, 0
      %s121 = sadd.s32 %s120, 1
      %s122 = scalar_select %p119, %s120, %s121
      %p125 = pneg %p119
      %p126 = scmp.eq.s32.totalorder %s19, 1
      %p127 = por %p125, %p126
      %p128 = scmp.ne.s32.totalorder %s120, %s123
      %p129 = scmp.eq.s32.totalorder %s19, 0
      %p130 = por %p128, %p129
      %p131 = scmp.ne.s32.totalorder %s120, %s123
      %p132 = scmp.eq.s32.totalorder %s24, 1
      %p133 = por %p131, %p132
      %p134 = scmp.ne.s32.totalorder %s123, %s124
      %p135 = scmp.eq.s32.totalorder %s24, 0
      %p136 = por %p134, %p135
      %p137 = scmp.ne.s32.totalorder %s123, %s124
      %p138 = scmp.eq.s32.totalorder %s25, 1
      %p139 = por %p137, %p138
      %p141 = scmp.ne.s32.totalorder %s124, %s140
      %p142 = scmp.eq.s32.totalorder %s25, 0
      %p143 = por %p141, %p142
      %s144 = ssub.s32 %s27, %s34
      %s145 = ssub.s32 %s26, %s38
      %s146 = sor.u32 %s144, %s145
      %p147 = scmp.eq.s32.totalorder %s146, 0
      %s149 = sadd.s32 %s148, 1
      %s150 = scalar_select %p147, %s148, %s149
      %p153 = pneg %p147
      %p154 = scmp.eq.s32.totalorder %s19, 1
      %p155 = por %p153, %p154
      %p156 = scmp.ne.s32.totalorder %s148, %s151
      %p157 = scmp.eq.s32.totalorder %s19, 0
      %p158 = por %p156, %p157
      %p159 = scmp.ne.s32.totalorder %s148, %s151
      %p160 = scmp.eq.s32.totalorder %s24, 1
      %p161 = por %p159, %p160
      %p162 = scmp.ne.s32.totalorder %s151, %s152
      %p163 = scmp.eq.s32.totalorder %s24, 0
      %p164 = por %p162, %p163
      %p165 = scmp.ne.s32.totalorder %s151, %s152
      %p166 = scmp.eq.s32.totalorder %s25, 1
      %p167 = por %p165, %p166
      %p169 = scmp.ne.s32.totalorder %s152, %s168
      %p170 = scmp.eq.s32.totalorder %s25, 0
      %p171 = por %p169, %p170
      %p172 = scmp.le.s32.totalorder 1, %s19
      %p173 = scmp.lt.s32.totalorder %s19, 3
      %p174 = pnand %p172, %p173
      %p175 = pneg %p174
      // Predicated region
      $region9: #{tpu_custom_call.1} parent=5 // pred_check
        _
      $region10: #{tpu_custom_call.1} parent=5 // pred_check_branch
        %177 = sbr.rel (%p174) target = $region12
      $region11: #{tpu_custom_call.1} parent=5 // pred_region
        %s178 = ssub.s32 %s19, 1
        // Predicated region
        $region13: #{tpu_custom_call.1} parent=11 // pred_check
          %p179 = pneg %p108
        $region14: #{tpu_custom_call.1} parent=11 // pred_check_branch
          %181 = sbr.rel (%p179) target = $region16
        $region15: #{tpu_custom_call.1} parent=11 // pred_region
          _
        $region16: #{tpu_custom_call.1} parent=11 // pred_fallthru
          _
      $region12: #{tpu_custom_call.1} parent=5 // pred_fallthru
        _
      %p182 = scmp.lt.s32.totalorder %s19, 2
      // Predicated region
      $region17: #{tpu_custom_call.1} parent=5 // pred_check
        %p183 = pneg %p182
      $region18: #{tpu_custom_call.1} parent=5 // pred_check_branch
        %185 = sbr.rel (%p183) target = $region20
      $region19: #{tpu_custom_call.1} parent=5 // pred_region
        // Predicated region
        $region21: #{tpu_custom_call.1} parent=19 // pred_check
          %p186 = pneg %p53
        $region22: #{tpu_custom_call.1} parent=19 // pred_check_branch
          %188 = sbr.rel (%p186) target = $region24
        $region23: #{tpu_custom_call.1} parent=19 // pred_region
          %s189 = sand.u32 %s43, 1
          %s190 = scalar_lea.sflag [#allocation3], %s189
          %s191 = sand.u32 %s43, 1
          %s192 = smul.addr %s191, 8
          %s193 = scalar_lea.vmem [#allocation2], %s192
          %s194 = smul.u32 2, %s26
          %s196 = ssub.s32 128, 128
          %197 = vsyncadd %s190, %s196
          %s198 = smul.addr %s27, 2
          %s199 = sadd.s32 %s194, %s198
          %s200 = smul.addr %s199, 64
          %s201 = scalar_lea.hbm %s0, %s200
          %s203 = sshll.u32 %s193, 4
          %s204 = int_to_ptr.vmem [resolvable:$true] %s203
          %206 = dma.hbm_to_vmem [thread:$0]  %s201, 128, %s204, %s190
        $region24: #{tpu_custom_call.1} parent=19 // pred_fallthru
          _
        // Predicated region
        $region25: #{tpu_custom_call.1} parent=19 // pred_check
          %p207 = pneg %p81
        $region26: #{tpu_custom_call.1} parent=19 // pred_check_branch
          %209 = sbr.rel (%p207) target = $region28
        $region27: #{tpu_custom_call.1} parent=19 // pred_region
          %s210 = sand.u32 %s71, 1
          %s211 = scalar_lea.sflag [#allocation6], %s210
          %s212 = sand.u32 %s71, 1
          %s213 = smul.addr %s212, 8
          %s214 = scalar_lea.vmem [#allocation5], %s213
          %s215 = smul.u32 2, %s26
          %s217 = ssub.s32 128, 128
          %218 = vsyncadd %s211, %s217
          %s219 = smul.addr %s27, 2
          %s220 = sadd.s32 %s215, %s219
          %s221 = smul.addr %s220, 64
          %s222 = scalar_lea.hbm %s1, %s221
          %s224 = sshll.u32 %s214, 4
          %s225 = int_to_ptr.vmem [resolvable:$true] %s224
          %227 = dma.hbm_to_vmem [thread:$0]  %s222, 128, %s225, %s211
        $region28: #{tpu_custom_call.1} parent=19 // pred_fallthru
          _
        // Predicated region
        $region29: #{tpu_custom_call.1} parent=19 // pred_check
          %p228 = pneg %p130
        $region30: #{tpu_custom_call.1} parent=19 // pred_check_branch
          %230 = sbr.rel (%p228) target = $region32
        $region31: #{tpu_custom_call.1} parent=19 // pred_region
          %s231 = smul.u32 2, %s26
          %p232 = scmp.lt.s32.totalorder %s27, 1
          %s233 = scalar_select %p232, %s27, 1
          %p234 = scmp.lt.s32.totalorder %s231, 1
          %s235 = scalar_select %p234, %s231, 1
          %s236 = smul.addr %s233, 2
          %s237 = sadd.s32 %s235, %s236
          %s238 = scalar_lea.vmem %s3, %s237
          %s239 = smul.u32 2, %s26
        $region32: #{tpu_custom_call.1} parent=19 // pred_fallthru
          _
      $region20: #{tpu_custom_call.1} parent=5 // pred_fallthru
        _
      %p240 = scmp.le.s32.totalorder 1, %s19
      %p241 = scmp.lt.s32.totalorder %s19, 3
      %p242 = pnand %p240, %p241
      %p243 = pneg %p242
      // Predicated region
      $region33: #{tpu_custom_call.1} parent=5 // pred_check
        _
      $region34: #{tpu_custom_call.1} parent=5 // pred_check_branch
        %245 = sbr.rel (%p242) target = $region36
      $region35: #{tpu_custom_call.1} parent=5 // pred_region
        %s246 = ssub.s32 %s19, 1
        %s247 = sand.u32 %s46, 1
        %s248 = scalar_lea.sflag [#allocation3], %s247
        %s249 = sand.u32 %s46, 1
        %s250 = smul.addr %s249, 8
        %s251 = scalar_lea.vmem [#allocation2], %s250
        // Predicated region
        $region37: #{tpu_custom_call.1} parent=35 // pred_check
          %p252 = pneg %p59
        $region38: #{tpu_custom_call.1} parent=35 // pred_check_branch
          %254 = sbr.rel (%p252) target = $region40
        $region39: #{tpu_custom_call.1} parent=35 // pred_region
          %255 = dma.done %s248, 128
        $region40: #{tpu_custom_call.1} parent=35 // pred_fallthru
          _
        %s256 = sand.u32 %s74, 1
        %s257 = scalar_lea.sflag [#allocation6], %s256
        %s258 = sand.u32 %s74, 1
        %s259 = smul.addr %s258, 8
        %s260 = scalar_lea.vmem [#allocation5], %s259
        // Predicated region
        $region41: #{tpu_custom_call.1} parent=35 // pred_check
          %p261 = pneg %p87
        $region42: #{tpu_custom_call.1} parent=35 // pred_check_branch
          %263 = sbr.rel (%p261) target = $region44
        $region43: #{tpu_custom_call.1} parent=35 // pred_region
          %264 = dma.done %s257, 128
        $region44: #{tpu_custom_call.1} parent=35 // pred_fallthru
          _
        %s265 = sand.u32 %s46, 1
        %s266 = scalar_lea.sflag [#allocation3], %s265
        %s267 = sand.u32 %s46, 1
        %s268 = smul.addr %s267, 8
        %s269 = scalar_lea.vmem [#allocation2], %s268
        %p270 = pneg %p59
        %p271 = pneg %p56
        %s272 = sand.u32 %s74, 1
        %s273 = scalar_lea.sflag [#allocation6], %s272
        %s274 = sand.u32 %s74, 1
        %s275 = smul.addr %s274, 8
        %s276 = scalar_lea.vmem [#allocation5], %s275
        %p277 = pneg %p87
        %p278 = pneg %p84
        %p279 = pneg %p108
        %p280 = pneg %p105
        %s281 = smul.u32 2, %s28
        %p282 = scmp.lt.s32.totalorder %s29, 1
        %s283 = scalar_select %p282, %s29, 1
        %p284 = scmp.lt.s32.totalorder %s281, 1
        %s285 = scalar_select %p284, %s281, 1
        %s286 = smul.addr %s283, 2
        %s287 = sadd.s32 %s285, %s286
        %s288 = scalar_lea.vmem %s3, %s287
        %p289 = pneg %p136
        %p290 = pneg %p133
        %p291 = pneg %p164
        %p292 = pneg %p161
        %s293 = sand.u32 %s151, 1
        %s294 = scalar_lea.sflag [#allocation4], %s293
        %s295 = sand.u32 %s151, 1
        %s296 = smul.addr %s295, 2
        %s297 = scalar_lea.vmem [#allocation7], %s296
        %s298 = smul.u32 2, %s28
        %s299 = smul.u32 2, %s28
        %s300 = smul.u32 2, %s28
        %p301 = scmp.lt.s32.totalorder %s29, 1
        %s302 = scalar_select %p301, %s29, 1
        %p303 = scmp.lt.s32.totalorder %s300, 1
        %s304 = scalar_select %p303, %s300, 1
        %s305 = smul.addr %s302, 2
        %s306 = sadd.s32 %s304, %s305
        %s307 = scalar_lea.vmem %s3, %s306
        %s308 = smul.u32 2, %s28
        %s309 = smul.u32 2, %s28
        %v310 = vld [vmem:[%s251] sm:$0xff]
        %v311 = vld [vmem:[%s260] sm:$0xff]
        %v312 = vand.u32 2147483647, %v311
        %v313 = vmin.f32 %v312, 1.0
        %v314 = vld [vmem:[%s2] sm:$0xf]
        %316 = vset.pattern.permute.xlu0 0
        %317 = vperm.xlu0 %316, %v314
        %v318 = vpop.permute.xlu0 %317
        %v320 = vunpack.c.l.s4 839922192
        %v321 = vunpack.c.0.s8 %v320
        %v322 = vlaneseq
        %v323 = vshrl.u32 %v322, 7
        %v324 = vsub.s32 %v321, %v323
        %v325 = vrot.slane %v318, %v324
        %v327 = vmul.f32 %v313, %v325
        %v328 = vadd.f32 %v310, %v327
        %v330 = vcombine.high %v328, %v328
        %vm332 = vcmask 1043456
        %v333 = vsel %vm332, %v328, -inf
        %v334 = vrot.slane %v333, 4
        %v335 = vmax.f32 %v333, %v334
        %v336 = vrot.slane %v335, 2
        %v337 = vmax.f32 %v335, %v336
        %v338 = vrot.slane %v337, 1
        %v339 = vmax.f32 %v337, %v338
        %v340 = vsel %vm332, %v330, -inf
        %v341 = vrot.slane %v340, 4
        %v342 = vmax.f32 %v340, %v341
        %v343 = vrot.slane %v342, 2
        %v344 = vmax.f32 %v342, %v343
        %v345 = vrot.slane %v344, 1
        %v346 = vmax.f32 %v344, %v345
        %v349 = vcombine.low %v339, %v346
        %v351 = vsub.f32 %v328, %v349
        %v352 = vmul.f32 %v351, 1.442695
        %v353 = vpow.pop %v352
        %v355 = vcombine.high %v353, %v353
        %v357 = vsel %vm332, %v353, 0.0
        %v358 = vrot.slane %v357, 4
        %v359 = vadd.f32 %v357, %v358
        %v360 = vrot.slane %v359, 2
        %v361 = vadd.f32 %v359, %v360
        %v362 = vrot.slane %v361, 1
        %v363 = vadd.f32 %v361, %v362
        %v364 = vsel %vm332, %v355, 0.0
        %v365 = vrot.slane %v364, 4
        %v366 = vadd.f32 %v364, %v365
        %v367 = vrot.slane %v366, 2
        %v368 = vadd.f32 %v366, %v367
        %v369 = vrot.slane %v368, 1
        %v370 = vadd.f32 %v368, %v369
        %v371 = vlog2.pop %v363
        %v372 = vmul.f32 %v371, 0.6931472
        %v373 = vlog2.pop %v370
        %v374 = vmul.f32 %v373, 0.6931472
        %v375 = vlaneseq
        %v376 = vshrl.u32 %v375, 7
        %v377 = vld [vmem:[%s307] sm:$0x3]
        %v378 = vlaneseq
        %v379 = vshrl.u32 %v378, 7
        %v380 = vsub.s32 0, %v379
        %v381 = vrot.slane %v377, %v380
        %v382 = vlaneseq
        %v383 = vshrl.u32 %v382, 7
        %v384 = vsub.s32 1, %v383
        %v385 = vrot.slane %v377, %v384
        %vm386 = vcmp.eq.s32.totalorder %v376, %v381
        %vm387 = vcmp.eq.s32.totalorder %v376, %v385
        %v389 = vcombine.high %v351, %v351
        %v391 = vsel %vm386, %v351, 0.0
        %v392 = vsel %vm387, %v389, 0.0
        %v393 = vsel %vm332, %v391, 0.0
        %v394 = vrot.slane %v393, 4
        %v395 = vadd.f32 %v393, %v394
        %v396 = vrot.slane %v395, 2
        %v397 = vadd.f32 %v395, %v396
        %v398 = vrot.slane %v397, 1
        %v399 = vadd.f32 %v397, %v398
        %v400 = vsel %vm332, %v392, 0.0
        %v401 = vrot.slane %v400, 4
        %v402 = vadd.f32 %v400, %v401
        %v403 = vrot.slane %v402, 2
        %v404 = vadd.f32 %v402, %v403
        %v405 = vrot.slane %v404, 1
        %v406 = vadd.f32 %v404, %v405
        %v407 = vsub.f32 %v372, %v399
        %v408 = vsub.f32 %v374, %v406
        %v411 = vcombine.low %v407, %v408
        %v413 = vunpack.c.l.s4 1966171168
        %v414 = vunpack.c.0.s8 %v413
        %v415 = vlaneseq
        %v416 = vshrl.u32 %v415, 7
        %v417 = vsub.s32 %v414, %v416
        %v418 = vrot.slane %v411, %v417
        %v420 = vunpack.c.l.s4 1966171168
        %v421 = vunpack.c.0.s8 %v420
        %v422 = vlaneseq
        %v423 = vshrl.u32 %v422, 7
        %v424 = vsub.s32 %v421, %v423
        %v425 = vrot.slane %v418, %v424
        %v427 = vlaneseq
        %vm428 = vcmp.ge.s32.totalorder %v427, 0
        %vm429 = vcmp.lt.s32.totalorder %v427, 256
        %vm430 = vmand %vm428, %vm429
        %431 = vst.msk [vmem:[%s297] sm:$0x3] %vm430, %v425
        %s432 = sand.u32 %s151, 1
        %s433 = scalar_lea.sflag [#allocation4], %s432
        %s434 = sand.u32 %s151, 1
        %s435 = smul.addr %s434, 2
        %s436 = scalar_lea.vmem [#allocation7], %s435
        // Predicated region
        $region45: #{tpu_custom_call.1} parent=35 // pred_check
          %p437 = pneg %p161
        $region46: #{tpu_custom_call.1} parent=35 // pred_check_branch
          %439 = sbr.rel (%p437) target = $region48
        $region47: #{tpu_custom_call.1} parent=35 // pred_region
          %s440 = smul.u32 2, %s28
          %s442 = ssub.s32 32, 32
          %443 = vsyncadd %s433, %s442
          %s444 = smul.addr %s29, 2
          %s445 = sadd.s32 %s440, %s444
          %s446 = smul.addr %s445, 16
          %s447 = scalar_lea.hbm %s4, %s446
          %s449 = sshll.u32 %s436, 4
          %s450 = int_to_ptr.vmem [resolvable:$true] %s449
          %452 = dma.vmem_to_hbm [thread:$0]  %s450, 32, %s447, %s433
        $region48: #{tpu_custom_call.1} parent=35 // pred_fallthru
          _
      $region36: #{tpu_custom_call.1} parent=5 // pred_fallthru
        _
      %p453 = scmp.le.s32.totalorder 2, %s19
      // Predicated region
      $region49: #{tpu_custom_call.1} parent=5 // pred_check
        %p454 = pneg %p453
      $region50: #{tpu_custom_call.1} parent=5 // pred_check_branch
        %456 = sbr.rel (%p454) target = $region52
      $region51: #{tpu_custom_call.1} parent=5 // pred_region
        %s457 = ssub.s32 %s19, 2
        // Predicated region
        $region53: #{tpu_custom_call.1} parent=51 // pred_check
          %p458 = pneg %p167
        $region54: #{tpu_custom_call.1} parent=51 // pred_check_branch
          %460 = sbr.rel (%p458) target = $region56
        $region55: #{tpu_custom_call.1} parent=51 // pred_region
          %s461 = sand.u32 %s152, 1
          %s462 = scalar_lea.sflag [#allocation4], %s461
          %s463 = sand.u32 %s152, 1
          %s464 = smul.addr %s463, 2
          %s465 = scalar_lea.vmem [#allocation7], %s464
          %466 = dma.done %s462, 32
        $region56: #{tpu_custom_call.1} parent=51 // pred_fallthru
          _
      $region52: #{tpu_custom_call.1} parent=5 // pred_fallthru
        _
    $region6: #{tpu_custom_call.1} parent=1 // loop_footer
      %s23 = sadd.s32 1, %s19
    $region7: #{tpu_custom_call.1} parent=1 // loop_footer_branch
      %18 = sbr.rel target = $region3
    $region8: #{tpu_custom_call.1} parent=1 // loop_exit
      _
    %467 = vsyncpa [#allocation3], 1
    %s468 = scalar_lea.sflag [#allocation3], 1
    %469 = vsyncpa %s468, 1
    %470 = vsyncpa [#allocation6], 1
    %s471 = scalar_lea.sflag [#allocation6], 1
    %472 = vsyncpa %s471, 1
    %473 = vsyncpa [#allocation4], 1
    %s474 = scalar_lea.sflag [#allocation4], 1
    %475 = vsyncpa %s474, 1

</llo_original>
